<compile_context>
chip_gen: v5e
topology: v5e:2x2
jax: 0.10.0
libtpu: 0.0.40
codegen_flags: <defaults>
</compile_context>

<pallas_src>
import jax
import jax.numpy as jnp
import numpy as np
from jax import lax
from jax.experimental import pallas as pl
from jax.experimental.pallas import tpu as pltpu


# ----------------------------- Pallas kernel ---------------------------------


def _shift_rows_masked(h, sample_len, direction):
    """Shift rows of h (R, C) by one along the stacked-length (sublane) axis.

    Samples occupy contiguous `sample_len`-row groups.  Rows whose shift would
    cross a sample boundary are zeroed (conv 'same' zero padding).
      direction=+1 -> row r receives h[r-1]  (previous position)
      direction=-1 -> row r receives h[r+1]  (next position)
    """
    R = h.shape[0]
    l_in_sample = lax.broadcasted_iota(jnp.int32, (R, 1), 0) % sample_len
    if direction == +1:
        shifted = pltpu.roll(h, 1, 0)          # row r <- h[r-1] (wraps; masked below)
        keep = l_in_sample != 0
    else:
        shifted = pltpu.roll(h, R - 1, 0)      # == roll by -1: row r <- h[r+1]
        keep = l_in_sample != (sample_len - 1)
    return jnp.where(keep, shifted, 0.0)


def _maxpool2_rows(h):
    """MaxPool1d(kernel=2, stride=2) along the stacked-length (sublane) axis.

    Length-2 pools never cross sample boundaries because each sample's length is even.
    """
    R, C = h.shape
    hr = h.reshape(R // 2, 2, C)
    return jnp.maximum(hr[:, 0, :], hr[:, 1, :])


def make_cnn_kernel(Bblk, L):
    L2, L4 = L // 2, L // 4

    def cnn_kernel(
        x_ref,   # (Bblk*L, 1)       stacked input, row = b*L + l
        c1_ref,  # (4, 32)           conv1: rows 0..2 = taps (Cin=1), row 3 = bias
        c2_ref,  # (97, 64)          conv2: rows k*32..k*32+31 = tap k, row 96 = bias
        f1_ref,  # (L4*64 + 1, 64)   fc1: row (l*64 + c) = weight, last row = bias
        f2_ref,  # (2, 64)           fc2: row 0 = weight, row 1 = [bias, 0, ..., 0]
        o_ref,   # (Bblk, 1)
    ):
        x = x_ref[...]                                            # (Bblk*L, 1) f32

        # ---- conv1 (Cin=1): shifted outer-products on the VPU (no MXU) ----
        x_prev = _shift_rows_masked(x, L, +1)
        x_next = _shift_rows_masked(x, L, -1)
        h = (x_prev * c1_ref[0:1, :]
             + x * c1_ref[1:2, :]
             + x_next * c1_ref[2:3, :]
             + c1_ref[3:4, :])                                    # (Bblk*L, 32)
        h = jnp.maximum(h, 0.0)
        h = _maxpool2_rows(h)                                     # (Bblk*L2, 32)
        # Dropout: identity in eval mode.

        # ---- conv2: three batched (Bblk*L2, 32) @ (32, 64) MXU matmuls ----
        h_prev = _shift_rows_masked(h, L2, +1)
        h_next = _shift_rows_masked(h, L2, -1)
        acc = jnp.dot(h_prev, c2_ref[0:32, :], preferred_element_type=jnp.float32)
        acc = acc + jnp.dot(h, c2_ref[32:64, :], preferred_element_type=jnp.float32)
        acc = acc + jnp.dot(h_next, c2_ref[64:96, :], preferred_element_type=jnp.float32)
        h = jnp.maximum(acc + c2_ref[96:97, :], 0.0)              # (Bblk*L2, 64)
        h = _maxpool2_rows(h)                                     # (Bblk*L4, 64)
        # Dropout: identity in eval mode.

        # ---- fc1: batched over all samples.  PyTorch flatten order (c*L4 + l) is
        # baked into the pre-permuted weight (row index l*64 + c), so fc1 is a sum of
        # L4 accumulating (Bblk, 64) @ (64, 64) dots (static unrolled).  This avoids a
        # sublane->lane reshape while keeping every dot batched over the whole block.
        h3 = h.reshape(Bblk, L4, 64)
        f = jnp.zeros((Bblk, 64), jnp.float32)
        for l in range(L4):
            f = f + jnp.dot(h3[:, l, :], f1_ref[l * 64:(l + 1) * 64, :],
                            preferred_element_type=jnp.float32)
        f = jnp.maximum(f + f1_ref[L4 * 64:L4 * 64 + 1, :], 0.0)  # (Bblk, 64)
        # Dropout: identity in eval mode.

        # ---- fc2 (64 -> 1): lane reduction instead of a degenerate N=1 matmul ----
        logit = jnp.sum(f * f2_ref[0:1, :], axis=-1, keepdims=True)  # (Bblk, 1)
        logit = logit + f2_ref[1:2, 0:1]
        o_ref[...] = jax.nn.sigmoid(logit)                        # single batched store

    return cnn_kernel


# ------------------------------ JAX wrapper -----------------------------------


def generalized_cnn_forward(x, params, *, batch_block=None):
    """x: (B, 1, L) float32, PyTorch NCL layout.  Returns (B, 1) sigmoid outputs."""
    w1, b1, w2, b2, fw1, fb1, fw2, fb2 = params
    B, cin, L = x.shape
    assert cin == 1 and L % 4 == 0, "kernel assumes Cin=1 and L % 4 == 0"
    L4 = L // 4

    if batch_block is None:
        batch_block = B                      # whole batch in one grid step
    assert B % batch_block == 0
    n_blocks = B // batch_block
    if n_blocks > 1:
        # (8, 128) tiling rule on partial blocks.
        assert (batch_block * L) % 8 == 0 and batch_block % 8 == 0

    # --- glue: permute/pack params into the kernel's (stacked-length, channel) layout ---
    x_rows = jnp.transpose(x, (0, 2, 1)).reshape(B * L, 1)        # row = b*L + l

    # conv1: (32,1,3) -> (3,32) taps, + bias row  => (4, 32)
    c1 = jnp.concatenate(
        [jnp.transpose(w1[:, 0, :], (1, 0)), b1.reshape(1, 32)], axis=0)
    # conv2: (64,32,3) -> (3*32, 64) with row k*32+cin, + bias row => (97, 64)
    c2 = jnp.concatenate(
        [jnp.transpose(w2, (2, 1, 0)).reshape(3 * 32, 64), b2.reshape(1, 64)], axis=0)
    # fc1: PyTorch flatten index is c*L4 + l; kernel rows are (b, l) with channel on
    # lanes, so reorder weight to row index l*64 + c.  + bias row => (L4*64 + 1, 64)
    f1 = jnp.concatenate(
        [jnp.transpose(fw1.reshape(64, 64, L4), (2, 1, 0)).reshape(L4 * 64, 64),
         fb1.reshape(1, 64)], axis=0)
    # fc2: weight row + bias (padded) row => (2, 64)
    f2 = jnp.concatenate(
        [fw2.reshape(1, 64), jnp.pad(fb2.reshape(1, 1), ((0, 0), (0, 63)))], axis=0)

    kernel = make_cnn_kernel(batch_block, L)

    out = pl.pallas_call(
        kernel,
        out_shape=jax.ShapeDtypeStruct((B, 1), jnp.float32),
        grid=(n_blocks,),
        in_specs=[
            pl.BlockSpec((batch_block * L, 1), lambda i: (i, 0)),
            pl.BlockSpec((4, 32), lambda i: (0, 0)),
            pl.BlockSpec((97, 64), lambda i: (0, 0)),
            pl.BlockSpec((L4 * 64 + 1, 64), lambda i: (0, 0)),
            pl.BlockSpec((2, 64), lambda i: (0, 0)),
        ],
        out_specs=pl.BlockSpec((batch_block, 1), lambda i: (i, 0)),
        compiler_params=pltpu.CompilerParams(
            dimension_semantics=("parallel",),     # batch blocks shard over v7x's 2 TCs
            vmem_limit_bytes=32 * 1024 * 1024,
        ),
    )(x_rows, c1, c2, f1, f2)

    return out


# ------------------------- pure-JAX reference (check) --------------------------


def reference_forward(x, params):
    w1, b1, w2, b2, fw1, fb1, fw2, fb2 = params

    def conv1d(h, w, b):
        B, _, L = h.shape
        hp = jnp.pad(h, ((0, 0), (0, 0), (1, 1)))
        out = jnp.zeros((B, w.shape[0], L), jnp.float32)
        for k in range(3):
            out = out + jnp.einsum("bcl,oc->bol", hp[:, :, k:k + L], w[:, :, k])
        return out + b[None, :, None]

    h = jax.nn.relu(conv1d(x, w1, b1))
    h = jnp.maximum(h[:, :, 0::2], h[:, :, 1::2])
    h = jax.nn.relu(conv1d(h, w2, b2))
    h = jnp.maximum(h[:, :, 0::2], h[:, :, 1::2])
    f = h.reshape(h.shape[0], -1)                          # channel-major flatten
    f = jax.nn.relu(f @ fw1.T + fb1)
    return jax.nn.sigmoid(f @ fw2.T + fb2)


# ---------------------------------- main ---------------------------------------


def make_params(key, L):
    ks = jax.random.split(key, 8)
    fc1_in = (L // 4) * 64
    w1 = jax.random.normal(ks[0], (32, 1, 3), jnp.float32) * 0.2
    b1 = jax.random.normal(ks[1], (32,), jnp.float32) * 0.1
    w2 = jax.random.normal(ks[2], (64, 32, 3), jnp.float32) * 0.05
    b2 = jax.random.normal(ks[3], (64,), jnp.float32) * 0.1
    fw1 = jax.random.normal(ks[4], (64, fc1_in), jnp.float32) * 0.05
    fb1 = jax.random.normal(ks[5], (64,), jnp.float32) * 0.1
    fw2 = jax.random.normal(ks[6], (1, 64), jnp.float32) * 0.1
    fb2 = jax.random.normal(ks[7], (1,), jnp.float32) * 0.1
    return (w1, b1, w2, b2, fw1, fb1, fw2, fb2)


if __name__ == "__main__":
    B, L = 4, 16  # input_shape = (16,) per sample -> fc1 in-features = 16//4 * 64 = 256
    key = jax.random.PRNGKey(0)
    kx, kp = jax.random.split(key)
    x = jax.random.normal(kx, (B, 1, L), jnp.float32)      # PyTorch NCL input
    params = make_params(kp, L)

    out = jax.block_until_ready(generalized_cnn_forward(x, params))
    ref = jax.block_until_ready(reference_forward(x, params))
    np.testing.assert_allclose(np.asarray(out), np.asarray(ref), rtol=2e-3, atol=2e-3)

    print("KERNEL_OK")
</pallas_src>

<mosaic_0001>
module attributes {stable_mosaic.version = 11 : i64} {
  func.func @cnn_kernel(%arg0: i32, %arg1: memref<64x1xf32, #tpu.memory_space<vmem>>, %arg2: memref<4x32xf32, #tpu.memory_space<vmem>>, %arg3: memref<97x64xf32, #tpu.memory_space<vmem>>, %arg4: memref<257x64xf32, #tpu.memory_space<vmem>>, %arg5: memref<2x64xf32, #tpu.memory_space<vmem>>, %arg6: memref<4x1xf32, #tpu.memory_space<vmem>>) attributes {dimension_semantics = [#tpu.dimension_semantics<parallel>], iteration_bounds = array<i64: 1>, scalar_prefetch = 0 : i64, scratch_operands = 0 : i64, tpu.core_type = #tpu.core_type<tc>, window_params = [{transform_indices = @transform_0, window_bounds = array<i64: 64, 1>}, {pipeline_mode = #tpu.pipeline_mode<synchronous>, transform_indices = @transform_1, window_bounds = array<i64: 4, 32>}, {pipeline_mode = #tpu.pipeline_mode<synchronous>, transform_indices = @transform_2, window_bounds = array<i64: 97, 64>}, {pipeline_mode = #tpu.pipeline_mode<synchronous>, transform_indices = @transform_3, window_bounds = array<i64: 257, 64>}, {pipeline_mode = #tpu.pipeline_mode<synchronous>, transform_indices = @transform_4, window_bounds = array<i64: 2, 64>}, {transform_indices = @transform_5, window_bounds = array<i64: 4, 1>}]} {
    %c0 = arith.constant 0 : index
    %c0_0 = arith.constant 0 : index
    %0 = vector.load %arg1[%c0, %c0_0] : memref<64x1xf32, #tpu.memory_space<vmem>>, vector<64x1xf32>
    %1 = tpu.iota {dimensions = array<i32: 0>} : vector<64x1xi32>
    %c16_i32 = arith.constant 16 : i32
    %c0_i32 = arith.constant 0 : i32
    %2 = arith.cmpi eq, %c16_i32, %c0_i32 : i32
    %c1_i32 = arith.constant 1 : i32
    %3 = arith.select %2, %c1_i32, %c16_i32 : i32
    %4 = vector.broadcast %3 : i32 to vector<64x1xi32>
    %5 = arith.remsi %1, %4 : vector<64x1xi32>
    %c0_i32_1 = arith.constant 0 : i32
    %6 = vector.broadcast %c0_i32_1 : i32 to vector<64x1xi32>
    %7 = arith.cmpi ne, %5, %6 : vector<64x1xi32>
    %c0_i32_2 = arith.constant 0 : i32
    %8 = vector.broadcast %c0_i32_2 : i32 to vector<64x1xi32>
    %9 = arith.cmpi slt, %5, %8 : vector<64x1xi32>
    %c0_i32_3 = arith.constant 0 : i32
    %10 = arith.cmpi slt, %3, %c0_i32_3 : i32
    %11 = vector.broadcast %10 : i1 to vector<64x1xi1>
    %12 = vector.broadcast %11 : vector<64x1xi1> to vector<64x1xi1>
    %13 = arith.xori %9, %12 : vector<64x1xi1>
    %14 = arith.andi %13, %7 : vector<64x1xi1>
    %15 = vector.broadcast %3 : i32 to vector<64x1xi32>
    %16 = arith.addi %5, %15 : vector<64x1xi32>
    %17 = arith.select %14, %16, %5 : vector<64x1xi1>, vector<64x1xi32>
    %c1_i32_4 = arith.constant 1 : i32
    %18 = tpu.dynamic_rotate %0 by %c1_i32_4 dim 0 : vector<64x1xf32>, i32 -> vector<64x1xf32>
    %c0_i32_5 = arith.constant 0 : i32
    %19 = vector.broadcast %c0_i32_5 : i32 to vector<64x1xi32>
    %20 = arith.cmpi ne, %17, %19 : vector<64x1xi32>
    %cst = arith.constant 0.000000e+00 : f32
    %21 = vector.broadcast %cst : f32 to vector<64x1xf32>
    %22 = arith.select %20, %18, %21 : vector<64x1xi1>, vector<64x1xf32>
    %23 = tpu.iota {dimensions = array<i32: 0>} : vector<64x1xi32>
    %c16_i32_6 = arith.constant 16 : i32
    %c0_i32_7 = arith.constant 0 : i32
    %24 = arith.cmpi eq, %c16_i32_6, %c0_i32_7 : i32
    %c1_i32_8 = arith.constant 1 : i32
    %25 = arith.select %24, %c1_i32_8, %c16_i32_6 : i32
    %26 = vector.broadcast %25 : i32 to vector<64x1xi32>
    %27 = arith.remsi %23, %26 : vector<64x1xi32>
    %c0_i32_9 = arith.constant 0 : i32
    %28 = vector.broadcast %c0_i32_9 : i32 to vector<64x1xi32>
    %29 = arith.cmpi ne, %27, %28 : vector<64x1xi32>
    %c0_i32_10 = arith.constant 0 : i32
    %30 = vector.broadcast %c0_i32_10 : i32 to vector<64x1xi32>
    %31 = arith.cmpi slt, %27, %30 : vector<64x1xi32>
    %c0_i32_11 = arith.constant 0 : i32
    %32 = arith.cmpi slt, %25, %c0_i32_11 : i32
    %33 = vector.broadcast %32 : i1 to vector<64x1xi1>
    %34 = vector.broadcast %33 : vector<64x1xi1> to vector<64x1xi1>
    %35 = arith.xori %31, %34 : vector<64x1xi1>
    %36 = arith.andi %35, %29 : vector<64x1xi1>
    %37 = vector.broadcast %25 : i32 to vector<64x1xi32>
    %38 = arith.addi %27, %37 : vector<64x1xi32>
    %39 = arith.select %36, %38, %27 : vector<64x1xi1>, vector<64x1xi32>
    %c63_i32 = arith.constant 63 : i32
    %40 = tpu.dynamic_rotate %0 by %c63_i32 dim 0 : vector<64x1xf32>, i32 -> vector<64x1xf32>
    %c15_i32 = arith.constant 15 : i32
    %41 = vector.broadcast %c15_i32 : i32 to vector<64x1xi32>
    %42 = arith.cmpi ne, %39, %41 : vector<64x1xi32>
    %cst_12 = arith.constant 0.000000e+00 : f32
    %43 = vector.broadcast %cst_12 : f32 to vector<64x1xf32>
    %44 = arith.select %42, %40, %43 : vector<64x1xi1>, vector<64x1xf32>
    %c0_13 = arith.constant 0 : index
    %c0_14 = arith.constant 0 : index
    %45 = vector.load %arg2[%c0_13, %c0_14] : memref<4x32xf32, #tpu.memory_space<vmem>>, vector<1x32xf32>
    %46 = vector.broadcast %22 : vector<64x1xf32> to vector<64x32xf32>
    %47 = vector.broadcast %45 : vector<1x32xf32> to vector<64x32xf32>
    %48 = arith.mulf %46, %47 : vector<64x32xf32>
    %c1 = arith.constant 1 : index
    %c0_15 = arith.constant 0 : index
    %49 = vector.load %arg2[%c1, %c0_15] : memref<4x32xf32, #tpu.memory_space<vmem>>, vector<1x32xf32>
    %50 = vector.broadcast %0 : vector<64x1xf32> to vector<64x32xf32>
    %51 = vector.broadcast %49 : vector<1x32xf32> to vector<64x32xf32>
    %52 = arith.mulf %50, %51 : vector<64x32xf32>
    %53 = arith.addf %48, %52 : vector<64x32xf32>
    %c2 = arith.constant 2 : index
    %c0_16 = arith.constant 0 : index
    %54 = vector.load %arg2[%c2, %c0_16] : memref<4x32xf32, #tpu.memory_space<vmem>>, vector<1x32xf32>
    %55 = vector.broadcast %44 : vector<64x1xf32> to vector<64x32xf32>
    %56 = vector.broadcast %54 : vector<1x32xf32> to vector<64x32xf32>
    %57 = arith.mulf %55, %56 : vector<64x32xf32>
    %58 = arith.addf %53, %57 : vector<64x32xf32>
    %c3 = arith.constant 3 : index
    %c0_17 = arith.constant 0 : index
    %59 = vector.load %arg2[%c3, %c0_17] : memref<4x32xf32, #tpu.memory_space<vmem>>, vector<1x32xf32>
    %60 = vector.broadcast %59 : vector<1x32xf32> to vector<64x32xf32>
    %61 = arith.addf %58, %60 : vector<64x32xf32>
    %cst_18 = arith.constant 0.000000e+00 : f32
    %62 = vector.broadcast %cst_18 : f32 to vector<64x32xf32>
    %63 = arith.maximumf %61, %62 : vector<64x32xf32>
    %64 = vector.shape_cast %63 : vector<64x32xf32> to vector<32x2x32xf32>
    %65 = vector.extract_strided_slice %64 {offsets = [0, 0, 0], sizes = [32, 1, 32], strides = [1, 1, 1]} : vector<32x2x32xf32> to vector<32x1x32xf32>
    %66 = vector.shape_cast %65 : vector<32x1x32xf32> to vector<32x32xf32>
    %67 = vector.extract_strided_slice %64 {offsets = [0, 1, 0], sizes = [32, 1, 32], strides = [1, 1, 1]} : vector<32x2x32xf32> to vector<32x1x32xf32>
    %68 = vector.shape_cast %67 : vector<32x1x32xf32> to vector<32x32xf32>
    %69 = arith.maximumf %66, %68 : vector<32x32xf32>
    %70 = tpu.iota {dimensions = array<i32: 0>} : vector<32x1xi32>
    %c8_i32 = arith.constant 8 : i32
    %c0_i32_19 = arith.constant 0 : i32
    %71 = arith.cmpi eq, %c8_i32, %c0_i32_19 : i32
    %c1_i32_20 = arith.constant 1 : i32
    %72 = arith.select %71, %c1_i32_20, %c8_i32 : i32
    %73 = vector.broadcast %72 : i32 to vector<32x1xi32>
    %74 = arith.remsi %70, %73 : vector<32x1xi32>
    %c0_i32_21 = arith.constant 0 : i32
    %75 = vector.broadcast %c0_i32_21 : i32 to vector<32x1xi32>
    %76 = arith.cmpi ne, %74, %75 : vector<32x1xi32>
    %c0_i32_22 = arith.constant 0 : i32
    %77 = vector.broadcast %c0_i32_22 : i32 to vector<32x1xi32>
    %78 = arith.cmpi slt, %74, %77 : vector<32x1xi32>
    %c0_i32_23 = arith.constant 0 : i32
    %79 = arith.cmpi slt, %72, %c0_i32_23 : i32
    %80 = vector.broadcast %79 : i1 to vector<32x1xi1>
    %81 = vector.broadcast %80 : vector<32x1xi1> to vector<32x1xi1>
    %82 = arith.xori %78, %81 : vector<32x1xi1>
    %83 = arith.andi %82, %76 : vector<32x1xi1>
    %84 = vector.broadcast %72 : i32 to vector<32x1xi32>
    %85 = arith.addi %74, %84 : vector<32x1xi32>
    %86 = arith.select %83, %85, %74 : vector<32x1xi1>, vector<32x1xi32>
    %c1_i32_24 = arith.constant 1 : i32
    %87 = tpu.dynamic_rotate %69 by %c1_i32_24 dim 0 : vector<32x32xf32>, i32 -> vector<32x32xf32>
    %c0_i32_25 = arith.constant 0 : i32
    %88 = vector.broadcast %c0_i32_25 : i32 to vector<32x1xi32>
    %89 = arith.cmpi ne, %86, %88 : vector<32x1xi32>
    %cst_26 = arith.constant 0.000000e+00 : f32
    %90 = vector.shape_cast %89 : vector<32x1xi1> to vector<32x1xi1>
    %91 = vector.broadcast %90 : vector<32x1xi1> to vector<32x32xi1>
    %92 = vector.broadcast %cst_26 : f32 to vector<32x32xf32>
    %93 = arith.select %91, %87, %92 : vector<32x32xi1>, vector<32x32xf32>
    %94 = tpu.iota {dimensions = array<i32: 0>} : vector<32x1xi32>
    %c8_i32_27 = arith.constant 8 : i32
    %c0_i32_28 = arith.constant 0 : i32
    %95 = arith.cmpi eq, %c8_i32_27, %c0_i32_28 : i32
    %c1_i32_29 = arith.constant 1 : i32
    %96 = arith.select %95, %c1_i32_29, %c8_i32_27 : i32
    %97 = vector.broadcast %96 : i32 to vector<32x1xi32>
    %98 = arith.remsi %94, %97 : vector<32x1xi32>
    %c0_i32_30 = arith.constant 0 : i32
    %99 = vector.broadcast %c0_i32_30 : i32 to vector<32x1xi32>
    %100 = arith.cmpi ne, %98, %99 : vector<32x1xi32>
    %c0_i32_31 = arith.constant 0 : i32
    %101 = vector.broadcast %c0_i32_31 : i32 to vector<32x1xi32>
    %102 = arith.cmpi slt, %98, %101 : vector<32x1xi32>
    %c0_i32_32 = arith.constant 0 : i32
    %103 = arith.cmpi slt, %96, %c0_i32_32 : i32
    %104 = vector.broadcast %103 : i1 to vector<32x1xi1>
    %105 = vector.broadcast %104 : vector<32x1xi1> to vector<32x1xi1>
    %106 = arith.xori %102, %105 : vector<32x1xi1>
    %107 = arith.andi %106, %100 : vector<32x1xi1>
    %108 = vector.broadcast %96 : i32 to vector<32x1xi32>
    %109 = arith.addi %98, %108 : vector<32x1xi32>
    %110 = arith.select %107, %109, %98 : vector<32x1xi1>, vector<32x1xi32>
    %c31_i32 = arith.constant 31 : i32
    %111 = tpu.dynamic_rotate %69 by %c31_i32 dim 0 : vector<32x32xf32>, i32 -> vector<32x32xf32>
    %c7_i32 = arith.constant 7 : i32
    %112 = vector.broadcast %c7_i32 : i32 to vector<32x1xi32>
    %113 = arith.cmpi ne, %110, %112 : vector<32x1xi32>
    %cst_33 = arith.constant 0.000000e+00 : f32
    %114 = vector.shape_cast %113 : vector<32x1xi1> to vector<32x1xi1>
    %115 = vector.broadcast %114 : vector<32x1xi1> to vector<32x32xi1>
    %116 = vector.broadcast %cst_33 : f32 to vector<32x32xf32>
    %117 = arith.select %115, %111, %116 : vector<32x32xi1>, vector<32x32xf32>
    %c0_34 = arith.constant 0 : index
    %c0_35 = arith.constant 0 : index
    %118 = vector.load %arg3[%c0_34, %c0_35] : memref<97x64xf32, #tpu.memory_space<vmem>>, vector<32x64xf32>
    %cst_36 = arith.constant dense<0.000000e+00> : vector<32x64xf32>
    %119 = tpu.matmul %93, %118, %cst_36 {dimension_numbers = #tpu.dot_dimension_numbers<[1], [0], [0], [1], [0, 0, 1, 1], [], []>} : vector<32x32xf32>, vector<32x64xf32>, vector<32x64xf32> -> vector<32x64xf32>
    %c32 = arith.constant 32 : index
    %c0_37 = arith.constant 0 : index
    %120 = vector.load %arg3[%c32, %c0_37] : memref<97x64xf32, #tpu.memory_space<vmem>>, vector<32x64xf32>
    %cst_38 = arith.constant dense<0.000000e+00> : vector<32x64xf32>
    %121 = tpu.matmul %69, %120, %cst_38 {dimension_numbers = #tpu.dot_dimension_numbers<[1], [0], [0], [1], [0, 0, 1, 1], [], []>} : vector<32x32xf32>, vector<32x64xf32>, vector<32x64xf32> -> vector<32x64xf32>
    %122 = arith.addf %119, %121 : vector<32x64xf32>
    %c64 = arith.constant 64 : index
    %c0_39 = arith.constant 0 : index
    %123 = vector.load %arg3[%c64, %c0_39] : memref<97x64xf32, #tpu.memory_space<vmem>>, vector<32x64xf32>
    %cst_40 = arith.constant dense<0.000000e+00> : vector<32x64xf32>
    %124 = tpu.matmul %117, %123, %cst_40 {dimension_numbers = #tpu.dot_dimension_numbers<[1], [0], [0], [1], [0, 0, 1, 1], [], []>} : vector<32x32xf32>, vector<32x64xf32>, vector<32x64xf32> -> vector<32x64xf32>
    %125 = arith.addf %122, %124 : vector<32x64xf32>
    %c96 = arith.constant 96 : index
    %c0_41 = arith.constant 0 : index
    %126 = vector.load %arg3[%c96, %c0_41] : memref<97x64xf32, #tpu.memory_space<vmem>>, vector<1x64xf32>
    %127 = vector.broadcast %126 : vector<1x64xf32> to vector<32x64xf32>
    %128 = arith.addf %125, %127 : vector<32x64xf32>
    %cst_42 = arith.constant 0.000000e+00 : f32
    %129 = vector.broadcast %cst_42 : f32 to vector<32x64xf32>
    %130 = arith.maximumf %128, %129 : vector<32x64xf32>
    %131 = vector.shape_cast %130 : vector<32x64xf32> to vector<16x2x64xf32>
    %132 = vector.extract_strided_slice %131 {offsets = [0, 0, 0], sizes = [16, 1, 64], strides = [1, 1, 1]} : vector<16x2x64xf32> to vector<16x1x64xf32>
    %133 = vector.shape_cast %132 : vector<16x1x64xf32> to vector<16x64xf32>
    %134 = vector.extract_strided_slice %131 {offsets = [0, 1, 0], sizes = [16, 1, 64], strides = [1, 1, 1]} : vector<16x2x64xf32> to vector<16x1x64xf32>
    %135 = vector.shape_cast %134 : vector<16x1x64xf32> to vector<16x64xf32>
    %136 = arith.maximumf %133, %135 : vector<16x64xf32>
    %137 = vector.shape_cast %136 : vector<16x64xf32> to vector<4x4x64xf32>
    %cst_43 = arith.constant 0.000000e+00 : f32
    %138 = vector.broadcast %cst_43 : f32 to vector<4x64xf32>
    %139 = vector.extract_strided_slice %137 {offsets = [0, 0, 0], sizes = [4, 1, 64], strides = [1, 1, 1]} : vector<4x4x64xf32> to vector<4x1x64xf32>
    %140 = vector.shape_cast %139 : vector<4x1x64xf32> to vector<4x64xf32>
    %c0_44 = arith.constant 0 : index
    %c0_45 = arith.constant 0 : index
    %141 = vector.load %arg4[%c0_44, %c0_45] : memref<257x64xf32, #tpu.memory_space<vmem>>, vector<64x64xf32>
    %cst_46 = arith.constant dense<0.000000e+00> : vector<4x64xf32>
    %142 = tpu.matmul %140, %141, %cst_46 {dimension_numbers = #tpu.dot_dimension_numbers<[1], [0], [0], [1], [0, 0, 1, 1], [], []>} : vector<4x64xf32>, vector<64x64xf32>, vector<4x64xf32> -> vector<4x64xf32>
    %143 = arith.addf %138, %142 : vector<4x64xf32>
    %144 = vector.extract_strided_slice %137 {offsets = [0, 1, 0], sizes = [4, 1, 64], strides = [1, 1, 1]} : vector<4x4x64xf32> to vector<4x1x64xf32>
    %145 = vector.shape_cast %144 : vector<4x1x64xf32> to vector<4x64xf32>
    %c64_47 = arith.constant 64 : index
    %c0_48 = arith.constant 0 : index
    %146 = vector.load %arg4[%c64_47, %c0_48] : memref<257x64xf32, #tpu.memory_space<vmem>>, vector<64x64xf32>
    %cst_49 = arith.constant dense<0.000000e+00> : vector<4x64xf32>
    %147 = tpu.matmul %145, %146, %cst_49 {dimension_numbers = #tpu.dot_dimension_numbers<[1], [0], [0], [1], [0, 0, 1, 1], [], []>} : vector<4x64xf32>, vector<64x64xf32>, vector<4x64xf32> -> vector<4x64xf32>
    %148 = arith.addf %143, %147 : vector<4x64xf32>
    %149 = vector.extract_strided_slice %137 {offsets = [0, 2, 0], sizes = [4, 1, 64], strides = [1, 1, 1]} : vector<4x4x64xf32> to vector<4x1x64xf32>
    %150 = vector.shape_cast %149 : vector<4x1x64xf32> to vector<4x64xf32>
    %c128 = arith.constant 128 : index
    %c0_50 = arith.constant 0 : index
    %151 = vector.load %arg4[%c128, %c0_50] : memref<257x64xf32, #tpu.memory_space<vmem>>, vector<64x64xf32>
    %cst_51 = arith.constant dense<0.000000e+00> : vector<4x64xf32>
    %152 = tpu.matmul %150, %151, %cst_51 {dimension_numbers = #tpu.dot_dimension_numbers<[1], [0], [0], [1], [0, 0, 1, 1], [], []>} : vector<4x64xf32>, vector<64x64xf32>, vector<4x64xf32> -> vector<4x64xf32>
    %153 = arith.addf %148, %152 : vector<4x64xf32>
    %154 = vector.extract_strided_slice %137 {offsets = [0, 3, 0], sizes = [4, 1, 64], strides = [1, 1, 1]} : vector<4x4x64xf32> to vector<4x1x64xf32>
    %155 = vector.shape_cast %154 : vector<4x1x64xf32> to vector<4x64xf32>
    %c192 = arith.constant 192 : index
    %c0_52 = arith.constant 0 : index
    %156 = vector.load %arg4[%c192, %c0_52] : memref<257x64xf32, #tpu.memory_space<vmem>>, vector<64x64xf32>
    %cst_53 = arith.constant dense<0.000000e+00> : vector<4x64xf32>
    %157 = tpu.matmul %155, %156, %cst_53 {dimension_numbers = #tpu.dot_dimension_numbers<[1], [0], [0], [1], [0, 0, 1, 1], [], []>} : vector<4x64xf32>, vector<64x64xf32>, vector<4x64xf32> -> vector<4x64xf32>
    %158 = arith.addf %153, %157 : vector<4x64xf32>
    %c256 = arith.constant 256 : index
    %c0_54 = arith.constant 0 : index
    %159 = vector.load %arg4[%c256, %c0_54] : memref<257x64xf32, #tpu.memory_space<vmem>>, vector<1x64xf32>
    %160 = vector.broadcast %159 : vector<1x64xf32> to vector<4x64xf32>
    %161 = arith.addf %158, %160 : vector<4x64xf32>
    %cst_55 = arith.constant 0.000000e+00 : f32
    %162 = vector.broadcast %cst_55 : f32 to vector<4x64xf32>
    %163 = arith.maximumf %161, %162 : vector<4x64xf32>
    %c0_56 = arith.constant 0 : index
    %c0_57 = arith.constant 0 : index
    %164 = vector.load %arg5[%c0_56, %c0_57] : memref<2x64xf32, #tpu.memory_space<vmem>>, vector<1x64xf32>
    %165 = vector.broadcast %164 : vector<1x64xf32> to vector<4x64xf32>
    %166 = arith.mulf %163, %165 : vector<4x64xf32>
    %cst_58 = arith.constant dense<0.000000e+00> : vector<4xf32>
    %167 = vector.multi_reduction <add>, %166, %cst_58 [1] : vector<4x64xf32> to vector<4xf32>
    %168 = vector.shape_cast %167 : vector<4xf32> to vector<4x1xf32>
    %c1_59 = arith.constant 1 : index
    %c0_60 = arith.constant 0 : index
    %169 = vector.load %arg5[%c1_59, %c0_60] : memref<2x64xf32, #tpu.memory_space<vmem>>, vector<1x1xf32>
    %170 = vector.broadcast %169 : vector<1x1xf32> to vector<4x1xf32>
    %171 = arith.addf %168, %170 : vector<4x1xf32>
    %172 = arith.negf %171 : vector<4x1xf32>
    %173 = math.exp %172 : vector<4x1xf32>
    %cst_61 = arith.constant 1.000000e+00 : f32
    %174 = vector.broadcast %cst_61 : f32 to vector<4x1xf32>
    %175 = arith.addf %174, %173 : vector<4x1xf32>
    %176 = arith.divf %174, %175 : vector<4x1xf32>
    %c0_62 = arith.constant 0 : index
    %c0_63 = arith.constant 0 : index
    %177 = vector.load %arg6[%c0_62, %c0_63] : memref<4x1xf32, #tpu.memory_space<vmem>>, vector<4x1xf32>
    tpu.vector_store %arg6[%c0_62, %c0_63], %176 {strides = array<i32>} : memref<4x1xf32, #tpu.memory_space<vmem>>, vector<4x1xf32>,
    return
  }
  func.func @transform_0(%arg0: i32) -> (i32, i32) {
    %c0_i32 = arith.constant 0 : i32
    %c0_i32_0 = arith.constant 0 : i32
    return %arg0, %c0_i32 : i32, i32
  }
  func.func @transform_1(%arg0: i32) -> (i32, i32) {
    %c0_i32 = arith.constant 0 : i32
    %c0_i32_0 = arith.constant 0 : i32
    %c0_i32_1 = arith.constant 0 : i32
    return %c0_i32, %c0_i32_0 : i32, i32
  }
  func.func @transform_2(%arg0: i32) -> (i32, i32) {
    %c0_i32 = arith.constant 0 : i32
    %c0_i32_0 = arith.constant 0 : i32
    %c0_i32_1 = arith.constant 0 : i32
    return %c0_i32, %c0_i32_0 : i32, i32
  }
  func.func @transform_3(%arg0: i32) -> (i32, i32) {
    %c0_i32 = arith.constant 0 : i32
    %c0_i32_0 = arith.constant 0 : i32
    %c0_i32_1 = arith.constant 0 : i32
    return %c0_i32, %c0_i32_0 : i32, i32
  }
  func.func @transform_4(%arg0: i32) -> (i32, i32) {
    %c0_i32 = arith.constant 0 : i32
    %c0_i32_0 = arith.constant 0 : i32
    %c0_i32_1 = arith.constant 0 : i32
    return %c0_i32, %c0_i32_0 : i32, i32
  }
  func.func @transform_5(%arg0: i32) -> (i32, i32) {
    %c0_i32 = arith.constant 0 : i32
    %c0_i32_0 = arith.constant 0 : i32
    return %arg0, %c0_i32 : i32, i32
  }
}

</mosaic_0001>

<llo_original>
// kernel: tpu_custom_call.1
$region0: #{tpu_custom_call.1}
  #allocation0 [shape = 'u32[]', space=smem, size = 0x4, offset = 0x4, fixed_abs, tag = 'smem constant byte address 0x4 - core index']
  #allocation1 [shape = 'u32[72,128]{1,0:T(1,128)}', space=vmem, size = 0x9000, scoped, tag = 'internal scratch']
  %s0 = inlined_call_operand.vmem [shape: f32[64,1], index: 0, kind: input, shape index: {}]
  %s1 = inlined_call_operand.vmem [shape: f32[4,32], index: 1, kind: input, shape index: {}]
  %s2 = inlined_call_operand.vmem [shape: f32[97,64], index: 2, kind: input, shape index: {}]
  %s3 = inlined_call_operand.vmem [shape: f32[257,64], index: 3, kind: input, shape index: {}]
  %s4 = inlined_call_operand.vmem [shape: f32[2,64], index: 4, kind: input, shape index: {}]
  %s5 = inlined_call_operand.vmem [shape: f32[4,1], index: 5, kind: output, shape index: {}]
  %s6 = sld [smem:[#allocation0]]
  $region30: #{tpu_custom_call.1} parent=0
    _
  %s8 = ssub.s32 1, %s6
  %s9 = scalar_select 0, %s8, %s6
  // Predicated region
  $region2: #{tpu_custom_call.1} parent=0 // pred_check
    _
  $region3: #{tpu_custom_call.1} parent=0 // pred_check_branch
    %11 = sbr.rel (0) target = $region5
  $region4: #{tpu_custom_call.1} parent=0 // pred_region
    _
  $region5: #{tpu_custom_call.1} parent=0 // pred_fallthru
    _
  // Predicated region
  $region6: #{tpu_custom_call.1} parent=0 // pred_check
    _
  $region7: #{tpu_custom_call.1} parent=0 // pred_check_branch
    %13 = sbr.rel (0) target = $region9
  $region8: #{tpu_custom_call.1} parent=0 // pred_region
    _
  $region9: #{tpu_custom_call.1} parent=0 // pred_fallthru
    _
  // Predicated region
  $region10: #{tpu_custom_call.1} parent=0 // pred_check
    _
  $region11: #{tpu_custom_call.1} parent=0 // pred_check_branch
    %15 = sbr.rel (0) target = $region13
  $region12: #{tpu_custom_call.1} parent=0 // pred_region
    _
  $region13: #{tpu_custom_call.1} parent=0 // pred_fallthru
    _
  // Predicated region
  $region14: #{tpu_custom_call.1} parent=0 // pred_check
    _
  $region15: #{tpu_custom_call.1} parent=0 // pred_check_branch
    %17 = sbr.rel (0) target = $region17
  $region16: #{tpu_custom_call.1} parent=0 // pred_region
    _
  $region17: #{tpu_custom_call.1} parent=0 // pred_fallthru
    _
  // Predicated region
  $region18: #{tpu_custom_call.1} parent=0 // pred_check
    _
  $region19: #{tpu_custom_call.1} parent=0 // pred_check_branch
    %19 = sbr.rel (0) target = $region21
  $region20: #{tpu_custom_call.1} parent=0 // pred_region
    _
  $region21: #{tpu_custom_call.1} parent=0 // pred_fallthru
    _
  %v20 = vld [vmem:[%s0] sm:$0xff]
  %v21 = vld [vmem:[%s0 + $0x8] sm:$0xff]
  %v22 = vld [vmem:[%s0 + $0x10] sm:$0xff]
  %v23 = vld [vmem:[%s0 + $0x18] sm:$0xff]
  %v24 = vld [vmem:[%s0 + $0x20] sm:$0xff]
  %v25 = vld [vmem:[%s0 + $0x28] sm:$0xff]
  %v26 = vld [vmem:[%s0 + $0x30] sm:$0xff]
  %v27 = vld [vmem:[%s0 + $0x38] sm:$0xff]
  %v28 = vlaneseq
  %v29 = vshrl.u32 %v28, 7
  %v30 = vadd.s32 %v29, 8
  %v31 = vadd.s32 %v29, 16
  %v32 = vadd.s32 %v29, 24
  %v33 = vadd.s32 %v29, 32
  %v34 = vadd.s32 %v29, 40
  %v35 = vadd.s32 %v29, 48
  %v36 = vadd.s32 %v29, 56
  %vm37 = vcmp.lt.s32.totalorder %v29, 0
  %v38 = vsub.s32 0, %v29
  %v39 = vsel %vm37, %v38, %v29
  %v40 = vshrl.u32 %v39, 4
  %v41 = vand.u32 %v39, 15
  %v42 = vsub.s32 0, %v41
  %v43 = vsel %vm37, %v42, %v41
  %vm44 = vcmp.lt.s32.totalorder %v30, 0
  %v45 = vsub.s32 0, %v30
  %v46 = vsel %vm44, %v45, %v30
  %v47 = vshrl.u32 %v46, 4
  %v48 = vand.u32 %v46, 15
  %v49 = vsub.s32 0, %v48
  %v50 = vsel %vm44, %v49, %v48
  %vm51 = vcmp.lt.s32.totalorder %v31, 0
  %v52 = vsub.s32 0, %v31
  %v53 = vsel %vm51, %v52, %v31
  %v54 = vshrl.u32 %v53, 4
  %v55 = vand.u32 %v53, 15
  %v56 = vsub.s32 0, %v55
  %v57 = vsel %vm51, %v56, %v55
  %vm58 = vcmp.lt.s32.totalorder %v32, 0
  %v59 = vsub.s32 0, %v32
  %v60 = vsel %vm58, %v59, %v32
  %v61 = vshrl.u32 %v60, 4
  %v62 = vand.u32 %v60, 15
  %v63 = vsub.s32 0, %v62
  %v64 = vsel %vm58, %v63, %v62
  %vm65 = vcmp.lt.s32.totalorder %v33, 0
  %v66 = vsub.s32 0, %v33
  %v67 = vsel %vm65, %v66, %v33
  %v68 = vshrl.u32 %v67, 4
  %v69 = vand.u32 %v67, 15
  %v70 = vsub.s32 0, %v69
  %v71 = vsel %vm65, %v70, %v69
  %vm72 = vcmp.lt.s32.totalorder %v34, 0
  %v73 = vsub.s32 0, %v34
  %v74 = vsel %vm72, %v73, %v34
  %v75 = vshrl.u32 %v74, 4
  %v76 = vand.u32 %v74, 15
  %v77 = vsub.s32 0, %v76
  %v78 = vsel %vm72, %v77, %v76
  %vm79 = vcmp.lt.s32.totalorder %v35, 0
  %v80 = vsub.s32 0, %v35
  %v81 = vsel %vm79, %v80, %v35
  %v82 = vshrl.u32 %v81, 4
  %v83 = vand.u32 %v81, 15
  %v84 = vsub.s32 0, %v83
  %v85 = vsel %vm79, %v84, %v83
  %vm86 = vcmp.lt.s32.totalorder %v36, 0
  %v87 = vsub.s32 0, %v36
  %v88 = vsel %vm86, %v87, %v36
  %v89 = vshrl.u32 %v88, 4
  %v90 = vand.u32 %v88, 15
  %v91 = vsub.s32 0, %v90
  %v92 = vsel %vm86, %v91, %v90
  %vm93 = vcmp.ne.s32.totalorder %v43, 0
  %vm94 = vcmp.ne.s32.totalorder %v50, 0
  %vm95 = vcmp.ne.s32.totalorder %v57, 0
  %vm96 = vcmp.ne.s32.totalorder %v64, 0
  %vm97 = vcmp.ne.s32.totalorder %v71, 0
  %vm98 = vcmp.ne.s32.totalorder %v78, 0
  %vm99 = vcmp.ne.s32.totalorder %v85, 0
  %vm100 = vcmp.ne.s32.totalorder %v92, 0
  %vm101 = vcmp.lt.s32.totalorder %v43, 0
  %vm102 = vcmp.lt.s32.totalorder %v50, 0
  %vm103 = vcmp.lt.s32.totalorder %v57, 0
  %vm104 = vcmp.lt.s32.totalorder %v64, 0
  %vm105 = vcmp.lt.s32.totalorder %v71, 0
  %vm106 = vcmp.lt.s32.totalorder %v78, 0
  %vm107 = vcmp.lt.s32.totalorder %v85, 0
  %vm108 = vcmp.lt.s32.totalorder %v92, 0
  %vm109 = vmand %vm101, %vm93
  %vm110 = vmand %vm102, %vm94
  %vm111 = vmand %vm103, %vm95
  %vm112 = vmand %vm104, %vm96
  %vm113 = vmand %vm105, %vm97
  %vm114 = vmand %vm106, %vm98
  %vm115 = vmand %vm107, %vm99
  %vm116 = vmand %vm108, %vm100
  %v117 = vadd.s32 %v43, 16
  %v118 = vadd.s32 %v50, 16
  %v119 = vadd.s32 %v57, 16
  %v120 = vadd.s32 %v64, 16
  %v121 = vadd.s32 %v71, 16
  %v122 = vadd.s32 %v78, 16
  %v123 = vadd.s32 %v85, 16
  %v124 = vadd.s32 %v92, 16
  %v125 = vsel %vm109, %v117, %v43
  %v126 = vsel %vm110, %v118, %v50
  %v127 = vsel %vm111, %v119, %v57
  %v128 = vsel %vm112, %v120, %v64
  %v129 = vsel %vm113, %v121, %v71
  %v130 = vsel %vm114, %v122, %v78
  %v131 = vsel %vm115, %v123, %v85
  %v132 = vsel %vm116, %v124, %v92
  %v133 = vrot.slane %v20, 7
  %v134 = vrot.slane %v21, 7
  %v135 = vrot.slane %v22, 7
  %v136 = vrot.slane %v23, 7
  %v137 = vrot.slane %v24, 7
  %v138 = vrot.slane %v25, 7
  %v139 = vrot.slane %v26, 7
  %v140 = vrot.slane %v27, 7
  %vm141 = vcmp.lt.s32.totalorder %v29, 1
  %v142 = vsel %vm141, %v139, %v140
  %v143 = vsel %vm141, %v138, %v139
  %v144 = vsel %vm141, %v137, %v138
  %v145 = vsel %vm141, %v136, %v137
  %v146 = vsel %vm141, %v135, %v136
  %v147 = vsel %vm141, %v134, %v135
  %v148 = vsel %vm141, %v133, %v134
  %v149 = vsel %vm141, %v140, %v133
  %vm150 = vcmp.ne.s32.totalorder %v125, 0
  %vm151 = vcmp.ne.s32.totalorder %v126, 0
  %vm152 = vcmp.ne.s32.totalorder %v127, 0
  %vm153 = vcmp.ne.s32.totalorder %v128, 0
  %vm154 = vcmp.ne.s32.totalorder %v129, 0
  %vm155 = vcmp.ne.s32.totalorder %v130, 0
  %vm156 = vcmp.ne.s32.totalorder %v131, 0
  %vm157 = vcmp.ne.s32.totalorder %v132, 0
  %v158 = vsel %vm150, %v149, 0.0
  %v159 = vsel %vm151, %v148, 0.0
  %v160 = vsel %vm152, %v147, 0.0
  %v161 = vsel %vm153, %v146, 0.0
  %v162 = vsel %vm154, %v145, 0.0
  %v163 = vsel %vm155, %v144, 0.0
  %v164 = vsel %vm156, %v143, 0.0
  %v165 = vsel %vm157, %v142, 0.0
  %v166 = vrot.slane %v20, 1
  %v167 = vrot.slane %v21, 1
  %v168 = vrot.slane %v22, 1
  %v169 = vrot.slane %v23, 1
  %v170 = vrot.slane %v24, 1
  %v171 = vrot.slane %v25, 1
  %v172 = vrot.slane %v26, 1
  %v173 = vrot.slane %v27, 1
  %vm174 = vcmp.lt.s32.totalorder %v29, 7
  %v175 = vsel %vm174, %v172, %v173
  %v176 = vsel %vm174, %v171, %v172
  %v177 = vsel %vm174, %v170, %v171
  %v178 = vsel %vm174, %v169, %v170
  %v179 = vsel %vm174, %v168, %v169
  %v180 = vsel %vm174, %v167, %v168
  %v181 = vsel %vm174, %v166, %v167
  %v182 = vsel %vm174, %v173, %v166
  %vm183 = vcmp.ne.s32.totalorder %v125, 15
  %vm184 = vcmp.ne.s32.totalorder %v126, 15
  %vm185 = vcmp.ne.s32.totalorder %v127, 15
  %vm186 = vcmp.ne.s32.totalorder %v128, 15
  %vm187 = vcmp.ne.s32.totalorder %v129, 15
  %vm188 = vcmp.ne.s32.totalorder %v130, 15
  %vm189 = vcmp.ne.s32.totalorder %v131, 15
  %vm190 = vcmp.ne.s32.totalorder %v132, 15
  %v191 = vsel %vm183, %v181, 0.0
  %v192 = vsel %vm184, %v180, 0.0
  %v193 = vsel %vm185, %v179, 0.0
  %v194 = vsel %vm186, %v178, 0.0
  %v195 = vsel %vm187, %v177, 0.0
  %v196 = vsel %vm188, %v176, 0.0
  %v197 = vsel %vm189, %v175, 0.0
  %v198 = vsel %vm190, %v182, 0.0
  %v199 = vld [vmem:[%s1] sm:$0x1]
  %201 = vset.pattern.permute.xlu0 0
  %202 = vperm.xlu0 %201, %v158
  %v203 = vpop.permute.xlu0 %202
  %206 = vset.pattern.permute.xlu0 0
  %207 = vperm.xlu0 %206, %v159
  %v208 = vpop.permute.xlu0 %207
  %211 = vset.pattern.permute.xlu0 0
  %212 = vperm.xlu0 %211, %v160
  %v213 = vpop.permute.xlu0 %212
  %216 = vset.pattern.permute.xlu0 0
  %217 = vperm.xlu0 %216, %v161
  %v218 = vpop.permute.xlu0 %217
  %221 = vset.pattern.permute.xlu0 0
  %222 = vperm.xlu0 %221, %v162
  %v223 = vpop.permute.xlu0 %222
  %226 = vset.pattern.permute.xlu0 0
  %227 = vperm.xlu0 %226, %v163
  %v228 = vpop.permute.xlu0 %227
  %231 = vset.pattern.permute.xlu0 0
  %232 = vperm.xlu0 %231, %v164
  %v233 = vpop.permute.xlu0 %232
  %236 = vset.pattern.permute.xlu0 0
  %237 = vperm.xlu0 %236, %v165
  %v238 = vpop.permute.xlu0 %237
  %v240 = vperm.slane %v199, 0
  %v241 = vmul.f32 %v203, %v240
  %v242 = vmul.f32 %v208, %v240
  %v243 = vmul.f32 %v213, %v240
  %v244 = vmul.f32 %v218, %v240
  %v245 = vmul.f32 %v223, %v240
  %v246 = vmul.f32 %v228, %v240
  %v247 = vmul.f32 %v233, %v240
  %v248 = vmul.f32 %v238, %v240
  %v249 = vld [vmem:[%s1 + $0x1] sm:$0x1]
  %251 = vset.pattern.permute.xlu0 0
  %252 = vperm.xlu0 %251, %v20
  %v253 = vpop.permute.xlu0 %252
  %256 = vset.pattern.permute.xlu0 0
  %257 = vperm.xlu0 %256, %v21
  %v258 = vpop.permute.xlu0 %257
  %261 = vset.pattern.permute.xlu0 0
  %262 = vperm.xlu0 %261, %v22
  %v263 = vpop.permute.xlu0 %262
  %266 = vset.pattern.permute.xlu0 0
  %267 = vperm.xlu0 %266, %v23
  %v268 = vpop.permute.xlu0 %267
  %271 = vset.pattern.permute.xlu0 0
  %272 = vperm.xlu0 %271, %v24
  %v273 = vpop.permute.xlu0 %272
  %276 = vset.pattern.permute.xlu0 0
  %277 = vperm.xlu0 %276, %v25
  %v278 = vpop.permute.xlu0 %277
  %281 = vset.pattern.permute.xlu0 0
  %282 = vperm.xlu0 %281, %v26
  %v283 = vpop.permute.xlu0 %282
  %286 = vset.pattern.permute.xlu0 0
  %287 = vperm.xlu0 %286, %v27
  %v288 = vpop.permute.xlu0 %287
  %v290 = vperm.slane %v249, 0
  %v291 = vmul.f32 %v253, %v290
  %v292 = vmul.f32 %v258, %v290
  %v293 = vmul.f32 %v263, %v290
  %v294 = vmul.f32 %v268, %v290
  %v295 = vmul.f32 %v273, %v290
  %v296 = vmul.f32 %v278, %v290
  %v297 = vmul.f32 %v283, %v290
  %v298 = vmul.f32 %v288, %v290
  %v299 = vadd.f32 %v241, %v291
  %v300 = vadd.f32 %v242, %v292
  %v301 = vadd.f32 %v243, %v293
  %v302 = vadd.f32 %v244, %v294
  %v303 = vadd.f32 %v245, %v295
  %v304 = vadd.f32 %v246, %v296
  %v305 = vadd.f32 %v247, %v297
  %v306 = vadd.f32 %v248, %v298
  %v307 = vld [vmem:[%s1 + $0x2] sm:$0x1]
  %309 = vset.pattern.permute.xlu0 0
  %310 = vperm.xlu0 %309, %v191
  %v311 = vpop.permute.xlu0 %310
  %314 = vset.pattern.permute.xlu0 0
  %315 = vperm.xlu0 %314, %v192
  %v316 = vpop.permute.xlu0 %315
  %319 = vset.pattern.permute.xlu0 0
  %320 = vperm.xlu0 %319, %v193
  %v321 = vpop.permute.xlu0 %320
  %324 = vset.pattern.permute.xlu0 0
  %325 = vperm.xlu0 %324, %v194
  %v326 = vpop.permute.xlu0 %325
  %329 = vset.pattern.permute.xlu0 0
  %330 = vperm.xlu0 %329, %v195
  %v331 = vpop.permute.xlu0 %330
  %334 = vset.pattern.permute.xlu0 0
  %335 = vperm.xlu0 %334, %v196
  %v336 = vpop.permute.xlu0 %335
  %339 = vset.pattern.permute.xlu0 0
  %340 = vperm.xlu0 %339, %v197
  %v341 = vpop.permute.xlu0 %340
  %344 = vset.pattern.permute.xlu0 0
  %345 = vperm.xlu0 %344, %v198
  %v346 = vpop.permute.xlu0 %345
  %v348 = vperm.slane %v307, 0
  %v349 = vmul.f32 %v311, %v348
  %v350 = vmul.f32 %v316, %v348
  %v351 = vmul.f32 %v321, %v348
  %v352 = vmul.f32 %v326, %v348
  %v353 = vmul.f32 %v331, %v348
  %v354 = vmul.f32 %v336, %v348
  %v355 = vmul.f32 %v341, %v348
  %v356 = vmul.f32 %v346, %v348
  %v357 = vadd.f32 %v299, %v349
  %v358 = vadd.f32 %v300, %v350
  %v359 = vadd.f32 %v301, %v351
  %v360 = vadd.f32 %v302, %v352
  %v361 = vadd.f32 %v303, %v353
  %v362 = vadd.f32 %v304, %v354
  %v363 = vadd.f32 %v305, %v355
  %v364 = vadd.f32 %v306, %v356
  %v365 = vld [vmem:[%s1 + $0x3] sm:$0x1]
  %v366 = vperm.slane %v365, 0
  %v367 = vadd.f32 %v357, %v366
  %v368 = vadd.f32 %v358, %v366
  %v369 = vadd.f32 %v359, %v366
  %v370 = vadd.f32 %v360, %v366
  %v371 = vadd.f32 %v361, %v366
  %v372 = vadd.f32 %v362, %v366
  %v373 = vadd.f32 %v363, %v366
  %v374 = vadd.f32 %v364, %v366
  %v375 = vmax.f32 %v367, 0.0
  %v376 = vmax.f32 %v368, 0.0
  %v377 = vmax.f32 %v369, 0.0
  %v378 = vmax.f32 %v370, 0.0
  %v379 = vmax.f32 %v371, 0.0
  %v380 = vmax.f32 %v372, 0.0
  %v381 = vmax.f32 %v373, 0.0
  %v382 = vmax.f32 %v374, 0.0
  %v391 = vrot.slane %v375, 2
  %v392 = vrot.slane %v375, 4
  %v393 = vrot.slane %v375, 6
  %v394 = vrot.slane %v376, 2
  %v395 = vrot.slane %v376, 4
  %v396 = vrot.slane %v376, 6
  %v397 = vrot.slane %v377, 2
  %v398 = vrot.slane %v377, 4
  %v399 = vrot.slane %v377, 6
  %v400 = vrot.slane %v378, 2
  %v401 = vrot.slane %v378, 4
  %v402 = vrot.slane %v378, 6
  %v403 = vrot.slane %v379, 2
  %v404 = vrot.slane %v379, 4
  %v405 = vrot.slane %v379, 6
  %v406 = vrot.slane %v380, 2
  %v407 = vrot.slane %v380, 4
  %v408 = vrot.slane %v380, 6
  %v409 = vrot.slane %v381, 2
  %v410 = vrot.slane %v381, 4
  %v411 = vrot.slane %v381, 6
  %v412 = vrot.slane %v382, 2
  %v413 = vrot.slane %v382, 4
  %v414 = vrot.slane %v382, 6
  %v439 = vrot.slane %v375, 7
  %v440 = vrot.slane %v439, 2
  %v441 = vrot.slane %v391, 7
  %v442 = vrot.slane %v441, 2
  %v443 = vrot.slane %v392, 7
  %v444 = vrot.slane %v443, 2
  %v445 = vrot.slane %v393, 7
  %v446 = vrot.slane %v445, 2
  %v447 = vrot.slane %v376, 7
  %v448 = vrot.slane %v447, 2
  %v449 = vrot.slane %v394, 7
  %v450 = vrot.slane %v449, 2
  %v451 = vrot.slane %v395, 7
  %v452 = vrot.slane %v451, 2
  %v453 = vrot.slane %v396, 7
  %v454 = vrot.slane %v453, 2
  %v455 = vrot.slane %v377, 7
  %v456 = vrot.slane %v455, 2
  %v457 = vrot.slane %v397, 7
  %v458 = vrot.slane %v457, 2
  %v459 = vrot.slane %v398, 7
  %v460 = vrot.slane %v459, 2
  %v461 = vrot.slane %v399, 7
  %v462 = vrot.slane %v461, 2
  %v463 = vrot.slane %v378, 7
  %v464 = vrot.slane %v463, 2
  %v465 = vrot.slane %v400, 7
  %v466 = vrot.slane %v465, 2
  %v467 = vrot.slane %v401, 7
  %v468 = vrot.slane %v467, 2
  %v469 = vrot.slane %v402, 7
  %v470 = vrot.slane %v469, 2
  %v471 = vrot.slane %v379, 7
  %v472 = vrot.slane %v471, 2
  %v473 = vrot.slane %v403, 7
  %v474 = vrot.slane %v473, 2
  %v475 = vrot.slane %v404, 7
  %v476 = vrot.slane %v475, 2
  %v477 = vrot.slane %v405, 7
  %v478 = vrot.slane %v477, 2
  %v479 = vrot.slane %v380, 7
  %v480 = vrot.slane %v479, 2
  %v481 = vrot.slane %v406, 7
  %v482 = vrot.slane %v481, 2
  %v483 = vrot.slane %v407, 7
  %v484 = vrot.slane %v483, 2
  %v485 = vrot.slane %v408, 7
  %v486 = vrot.slane %v485, 2
  %v487 = vrot.slane %v381, 7
  %v488 = vrot.slane %v487, 2
  %v489 = vrot.slane %v409, 7
  %v490 = vrot.slane %v489, 2
  %v491 = vrot.slane %v410, 7
  %v492 = vrot.slane %v491, 2
  %v493 = vrot.slane %v411, 7
  %v494 = vrot.slane %v493, 2
  %v495 = vrot.slane %v382, 7
  %v496 = vrot.slane %v495, 2
  %v497 = vrot.slane %v412, 7
  %v498 = vrot.slane %v497, 2
  %v499 = vrot.slane %v413, 7
  %v500 = vrot.slane %v499, 2
  %v501 = vrot.slane %v414, 7
  %v502 = vrot.slane %v501, 2
  %v535 = vmax.f32 %v375, %v440
  %v536 = vmax.f32 %v391, %v442
  %v537 = vmax.f32 %v392, %v444
  %v538 = vmax.f32 %v393, %v446
  %v539 = vmax.f32 %v376, %v448
  %v540 = vmax.f32 %v394, %v450
  %v541 = vmax.f32 %v395, %v452
  %v542 = vmax.f32 %v396, %v454
  %v543 = vmax.f32 %v377, %v456
  %v544 = vmax.f32 %v397, %v458
  %v545 = vmax.f32 %v398, %v460
  %v546 = vmax.f32 %v399, %v462
  %v547 = vmax.f32 %v378, %v464
  %v548 = vmax.f32 %v400, %v466
  %v549 = vmax.f32 %v401, %v468
  %v550 = vmax.f32 %v402, %v470
  %v551 = vmax.f32 %v379, %v472
  %v552 = vmax.f32 %v403, %v474
  %v553 = vmax.f32 %v404, %v476
  %v554 = vmax.f32 %v405, %v478
  %v555 = vmax.f32 %v380, %v480
  %v556 = vmax.f32 %v406, %v482
  %v557 = vmax.f32 %v407, %v484
  %v558 = vmax.f32 %v408, %v486
  %v559 = vmax.f32 %v381, %v488
  %v560 = vmax.f32 %v409, %v490
  %v561 = vmax.f32 %v410, %v492
  %v562 = vmax.f32 %v411, %v494
  %v563 = vmax.f32 %v382, %v496
  %v564 = vmax.f32 %v412, %v498
  %v565 = vmax.f32 %v413, %v500
  %v566 = vmax.f32 %v414, %v502
  %vm567 = vcmp.lt.s32.totalorder %v29, 0
  %v568 = vsub.s32 0, %v29
  %v569 = vsel %vm567, %v568, %v29
  %v570 = vshrl.u32 %v569, 3
  %v571 = vand.u32 %v569, 7
  %v572 = vsub.s32 0, %v571
  %v573 = vsel %vm567, %v572, %v571
  %vm574 = vcmp.lt.s32.totalorder %v30, 0
  %v575 = vsub.s32 0, %v30
  %v576 = vsel %vm574, %v575, %v30
  %v577 = vshrl.u32 %v576, 3
  %v578 = vand.u32 %v576, 7
  %v579 = vsub.s32 0, %v578
  %v580 = vsel %vm574, %v579, %v578
  %vm581 = vcmp.lt.s32.totalorder %v31, 0
  %v582 = vsub.s32 0, %v31
  %v583 = vsel %vm581, %v582, %v31
  %v584 = vshrl.u32 %v583, 3
  %v585 = vand.u32 %v583, 7
  %v586 = vsub.s32 0, %v585
  %v587 = vsel %vm581, %v586, %v585
  %vm588 = vcmp.lt.s32.totalorder %v32, 0
  %v589 = vsub.s32 0, %v32
  %v590 = vsel %vm588, %v589, %v32
  %v591 = vshrl.u32 %v590, 3
  %v592 = vand.u32 %v590, 7
  %v593 = vsub.s32 0, %v592
  %v594 = vsel %vm588, %v593, %v592
  %vm595 = vcmp.ne.s32.totalorder %v573, 0
  %vm596 = vcmp.ne.s32.totalorder %v580, 0
  %vm597 = vcmp.ne.s32.totalorder %v587, 0
  %vm598 = vcmp.ne.s32.totalorder %v594, 0
  %vm599 = vcmp.lt.s32.totalorder %v573, 0
  %vm600 = vcmp.lt.s32.totalorder %v580, 0
  %vm601 = vcmp.lt.s32.totalorder %v587, 0
  %vm602 = vcmp.lt.s32.totalorder %v594, 0
  %vm603 = vmand %vm599, %vm595
  %vm604 = vmand %vm600, %vm596
  %vm605 = vmand %vm601, %vm597
  %vm606 = vmand %vm602, %vm598
  %v607 = vadd.s32 %v573, 8
  %v608 = vadd.s32 %v580, 8
  %v609 = vadd.s32 %v587, 8
  %v610 = vadd.s32 %v594, 8
  %v611 = vsel %vm603, %v607, %v573
  %v612 = vsel %vm604, %v608, %v580
  %v613 = vsel %vm605, %v609, %v587
  %v614 = vsel %vm606, %v610, %v594
  %v647 = vperm.slane %v535, 0
  %v648 = vperm.slane %v536, 0
  %v649 = vperm.slane %v537, 0
  %v650 = vperm.slane %v538, 0
  %v651 = vperm.slane %v539, 0
  %v652 = vperm.slane %v540, 0
  %v653 = vperm.slane %v541, 0
  %v654 = vperm.slane %v542, 0
  %v655 = vperm.slane %v543, 0
  %v656 = vperm.slane %v544, 0
  %v657 = vperm.slane %v545, 0
  %v658 = vperm.slane %v546, 0
  %v659 = vperm.slane %v547, 0
  %v660 = vperm.slane %v548, 0
  %v661 = vperm.slane %v549, 0
  %v662 = vperm.slane %v550, 0
  %v663 = vperm.slane %v551, 0
  %v664 = vperm.slane %v552, 0
  %v665 = vperm.slane %v553, 0
  %v666 = vperm.slane %v554, 0
  %v667 = vperm.slane %v555, 0
  %v668 = vperm.slane %v556, 0
  %v669 = vperm.slane %v557, 0
  %v670 = vperm.slane %v558, 0
  %v671 = vperm.slane %v559, 0
  %v672 = vperm.slane %v560, 0
  %v673 = vperm.slane %v561, 0
  %v674 = vperm.slane %v562, 0
  %v675 = vperm.slane %v563, 0
  %v676 = vperm.slane %v564, 0
  %v677 = vperm.slane %v565, 0
  %v678 = vperm.slane %v566, 0
  %vm679 = vcmask 1041409
  %v680 = vsel %vm679, %v648, %v647
  %vm681 = vcmask 1042434
  %v682 = vsel %vm681, %v649, %v680
  %vm683 = vcmask 1043459
  %v684 = vsel %vm683, %v650, %v682
  %vm685 = vcmask 1044484
  %v686 = vsel %vm685, %v651, %v684
  %vm687 = vcmask 1045509
  %v688 = vsel %vm687, %v652, %v686
  %vm689 = vcmask 1046534
  %v690 = vsel %vm689, %v653, %v688
  %vm691 = vcmask 1047559
  %v692 = vsel %vm691, %v654, %v690
  %v693 = vsel %vm679, %v656, %v655
  %v694 = vsel %vm681, %v657, %v693
  %v695 = vsel %vm683, %v658, %v694
  %v696 = vsel %vm685, %v659, %v695
  %v697 = vsel %vm687, %v660, %v696
  %v698 = vsel %vm689, %v661, %v697
  %v699 = vsel %vm691, %v662, %v698
  %v700 = vsel %vm679, %v664, %v663
  %v701 = vsel %vm681, %v665, %v700
  %v702 = vsel %vm683, %v666, %v701
  %v703 = vsel %vm685, %v667, %v702
  %v704 = vsel %vm687, %v668, %v703
  %v705 = vsel %vm689, %v669, %v704
  %v706 = vsel %vm691, %v670, %v705
  %v707 = vsel %vm679, %v672, %v671
  %v708 = vsel %vm681, %v673, %v707
  %v709 = vsel %vm683, %v674, %v708
  %v710 = vsel %vm685, %v675, %v709
  %v711 = vsel %vm687, %v676, %v710
  %v712 = vsel %vm689, %v677, %v711
  %v713 = vsel %vm691, %v678, %v712
  %v718 = vrot.slane %v692, 7
  %v719 = vrot.slane %v699, 7
  %v720 = vrot.slane %v706, 7
  %v721 = vrot.slane %v713, 7
  %v722 = vsel %vm141, %v720, %v721
  %v723 = vsel %vm141, %v719, %v720
  %v724 = vsel %vm141, %v718, %v719
  %v725 = vsel %vm141, %v721, %v718
  %vm726 = vcmp.ne.s32.totalorder %v611, 0
  %vm727 = vcmp.ne.s32.totalorder %v612, 0
  %vm728 = vcmp.ne.s32.totalorder %v613, 0
  %vm729 = vcmp.ne.s32.totalorder %v614, 0
  %v730 = vsel %vm726, 1, 0
  %v731 = vsel %vm727, 1, 0
  %v732 = vsel %vm728, 1, 0
  %v733 = vsel %vm729, 1, 0
  %vm734 = vcmp.eq.s32.totalorder %v730, 1
  %vm735 = vcmp.eq.s32.totalorder %v731, 1
  %vm736 = vcmp.eq.s32.totalorder %v732, 1
  %vm737 = vcmp.eq.s32.totalorder %v733, 1
  %v738 = vsel %vm734, %v725, 0.0
  %v739 = vsel %vm735, %v724, 0.0
  %v740 = vsel %vm736, %v723, 0.0
  %v741 = vsel %vm737, %v722, 0.0
  %v742 = vrot.slane %v692, 1
  %v743 = vrot.slane %v699, 1
  %v744 = vrot.slane %v706, 1
  %v745 = vrot.slane %v713, 1
  %v746 = vsel %vm174, %v744, %v745
  %v747 = vsel %vm174, %v743, %v744
  %v748 = vsel %vm174, %v742, %v743
  %v749 = vsel %vm174, %v745, %v742
  %vm750 = vcmp.ne.s32.totalorder %v611, 7
  %vm751 = vcmp.ne.s32.totalorder %v612, 7
  %vm752 = vcmp.ne.s32.totalorder %v613, 7
  %vm753 = vcmp.ne.s32.totalorder %v614, 7
  %v754 = vsel %vm750, 1, 0
  %v755 = vsel %vm751, 1, 0
  %v756 = vsel %vm752, 1, 0
  %v757 = vsel %vm753, 1, 0
  %vm758 = vcmp.eq.s32.totalorder %v754, 1
  %vm759 = vcmp.eq.s32.totalorder %v755, 1
  %vm760 = vcmp.eq.s32.totalorder %v756, 1
  %vm761 = vcmp.eq.s32.totalorder %v757, 1
  %v762 = vsel %vm758, %v748, 0.0
  %v763 = vsel %vm759, %v747, 0.0
  %v764 = vsel %vm760, %v746, 0.0
  %v765 = vsel %vm761, %v749, 0.0
  %v766 = vld [vmem:[%s2] sm:$0xff]
  %v767 = vld [vmem:[%s2 + $0x8] sm:$0xff]
  %v768 = vld [vmem:[%s2 + $0x10] sm:$0xff]
  %v769 = vld [vmem:[%s2 + $0x18] sm:$0xff]
  %v770 = vld [vmem:[%s2 + $0x20] sm:$0xff]
  %v771 = vld [vmem:[%s2 + $0x28] sm:$0xff]
  %v772 = vld [vmem:[%s2 + $0x30] sm:$0xff]
  %v773 = vld [vmem:[%s2 + $0x38] sm:$0xff]
  %vm774 = vcmask 261120
  %v775 = vsel %vm774, %v692, 0
  %v777 = vsel %vm774, %v699, 0
  %v779 = vsel %vm774, %v706, 0
  %v781 = vsel %vm774, %v713, 0
  %783 = vmatpush.msra.mxu0 0.0
  %784 = vmatpush.msra.mxu0 0.0
  %785 = vmatpush.msra.mxu0 0.0
  %786 = vmatpush.msra.mxu0 0.0
  %787 = vmatpush.msra.mxu0 0.0
  %788 = vmatpush.msra.mxu0 0.0
  %789 = vmatpush.msra.mxu0 0.0
  %790 = vmatpush.msra.mxu0 0.0
  %791 = vmatpush.msra.mxu0 0.0
  %792 = vmatpush.msra.mxu0 0.0
  %793 = vmatpush.msra.mxu0 0.0
  %794 = vmatpush.msra.mxu0 0.0
  %795 = vmatpush.msra.mxu0 %v773
  %796 = vmatpush.msra.mxu0 %v772
  %797 = vmatpush.msra.mxu0 %v771
  %798 = vmatpush.msra.mxu0 %v770
  %799 = vmatmul.f32.gmra.mxu0 %v775
  %v800 = vpop.f32.mrf.mxu0
  %v801 = vadd.f32 0.0, %v800
  %802 = vmatmul.f32.gmra.mxu0 %v777
  %v803 = vpop.f32.mrf.mxu0
  %v804 = vadd.f32 0.0, %v803
  %805 = vmatmul.f32.gmra.mxu0 %v779
  %v806 = vpop.f32.mrf.mxu0
  %v807 = vadd.f32 0.0, %v806
  %808 = vmatmul.f32.gmra.mxu0 %v781
  %v809 = vpop.f32.mrf.mxu0
  %v810 = vadd.f32 0.0, %v809
  %811 = vdwg.mxu0
  %v813 = vsel %vm774, %v738, 0
  %v816 = vsel %vm774, %v739, 0
  %v819 = vsel %vm774, %v740, 0
  %v822 = vsel %vm774, %v741, 0
  %824 = vmatpush.msra.mxu0 0.0
  %825 = vmatpush.msra.mxu0 0.0
  %826 = vmatpush.msra.mxu0 0.0
  %827 = vmatpush.msra.mxu0 0.0
  %828 = vmatpush.msra.mxu0 0.0
  %829 = vmatpush.msra.mxu0 0.0
  %830 = vmatpush.msra.mxu0 0.0
  %831 = vmatpush.msra.mxu0 0.0
  %832 = vmatpush.msra.mxu0 0.0
  %833 = vmatpush.msra.mxu0 0.0
  %834 = vmatpush.msra.mxu0 0.0
  %835 = vmatpush.msra.mxu0 0.0
  %836 = vmatpush.msra.mxu0 %v769
  %837 = vmatpush.msra.mxu0 %v768
  %838 = vmatpush.msra.mxu0 %v767
  %839 = vmatpush.msra.mxu0 %v766
  %840 = vmatmul.f32.gmra.mxu0 %v813
  %v841 = vpop.f32.mrf.mxu0
  %v842 = vadd.f32 %v801, %v841
  %843 = vmatmul.f32.gmra.mxu0 %v816
  %v844 = vpop.f32.mrf.mxu0
  %v845 = vadd.f32 %v804, %v844
  %846 = vmatmul.f32.gmra.mxu0 %v819
  %v847 = vpop.f32.mrf.mxu0
  %v848 = vadd.f32 %v807, %v847
  %849 = vmatmul.f32.gmra.mxu0 %v822
  %v850 = vpop.f32.mrf.mxu0
  %v851 = vadd.f32 %v810, %v850
  %852 = vdwg.mxu0
  %v853 = vld [vmem:[%s2 + $0x40] sm:$0xff]
  %v854 = vld [vmem:[%s2 + $0x48] sm:$0xff]
  %v855 = vld [vmem:[%s2 + $0x50] sm:$0xff]
  %v856 = vld [vmem:[%s2 + $0x58] sm:$0xff]
  %v858 = vsel %vm774, %v762, 0
  %v861 = vsel %vm774, %v763, 0
  %v864 = vsel %vm774, %v764, 0
  %v867 = vsel %vm774, %v765, 0
  %869 = vmatpush.msra.mxu0 0.0
  %870 = vmatpush.msra.mxu0 0.0
  %871 = vmatpush.msra.mxu0 0.0
  %872 = vmatpush.msra.mxu0 0.0
  %873 = vmatpush.msra.mxu0 0.0
  %874 = vmatpush.msra.mxu0 0.0
  %875 = vmatpush.msra.mxu0 0.0
  %876 = vmatpush.msra.mxu0 0.0
  %877 = vmatpush.msra.mxu0 0.0
  %878 = vmatpush.msra.mxu0 0.0
  %879 = vmatpush.msra.mxu0 0.0
  %880 = vmatpush.msra.mxu0 0.0
  %881 = vmatpush.msra.mxu0 %v856
  %882 = vmatpush.msra.mxu0 %v855
  %883 = vmatpush.msra.mxu0 %v854
  %884 = vmatpush.msra.mxu0 %v853
  %885 = vmatmul.f32.gmra.mxu0 %v858
  %v886 = vpop.f32.mrf.mxu0
  %v887 = vadd.f32 0.0, %v886
  %888 = vmatmul.f32.gmra.mxu0 %v861
  %v889 = vpop.f32.mrf.mxu0
  %v890 = vadd.f32 0.0, %v889
  %891 = vmatmul.f32.gmra.mxu0 %v864
  %v892 = vpop.f32.mrf.mxu0
  %v893 = vadd.f32 0.0, %v892
  %894 = vmatmul.f32.gmra.mxu0 %v867
  %v895 = vpop.f32.mrf.mxu0
  %v896 = vadd.f32 0.0, %v895
  %897 = vdwg.mxu0
  %v898 = vadd.f32 %v842, %v887
  %v899 = vadd.f32 %v845, %v890
  %v900 = vadd.f32 %v848, %v893
  %v901 = vadd.f32 %v851, %v896
  %v902 = vld [vmem:[%s2 + $0x60] sm:$0x1]
  %v903 = vperm.slane %v902, 0
  %v904 = vadd.f32 %v898, %v903
  %v905 = vadd.f32 %v899, %v903
  %v906 = vadd.f32 %v900, %v903
  %v907 = vadd.f32 %v901, %v903
  %v908 = vmax.f32 %v904, 0.0
  %v909 = vmax.f32 %v905, 0.0
  %v910 = vmax.f32 %v906, 0.0
  %v911 = vmax.f32 %v907, 0.0
  %v916 = vrot.slane %v908, 2
  %v917 = vrot.slane %v908, 4
  %v918 = vrot.slane %v908, 6
  %v919 = vrot.slane %v909, 2
  %v920 = vrot.slane %v909, 4
  %v921 = vrot.slane %v909, 6
  %v922 = vrot.slane %v910, 2
  %v923 = vrot.slane %v910, 4
  %v924 = vrot.slane %v910, 6
  %v925 = vrot.slane %v911, 2
  %v926 = vrot.slane %v911, 4
  %v927 = vrot.slane %v911, 6
  %v940 = vrot.slane %v908, 7
  %v941 = vrot.slane %v940, 2
  %v942 = vrot.slane %v916, 7
  %v943 = vrot.slane %v942, 2
  %v944 = vrot.slane %v917, 7
  %v945 = vrot.slane %v944, 2
  %v946 = vrot.slane %v918, 7
  %v947 = vrot.slane %v946, 2
  %v948 = vrot.slane %v909, 7
  %v949 = vrot.slane %v948, 2
  %v950 = vrot.slane %v919, 7
  %v951 = vrot.slane %v950, 2
  %v952 = vrot.slane %v920, 7
  %v953 = vrot.slane %v952, 2
  %v954 = vrot.slane %v921, 7
  %v955 = vrot.slane %v954, 2
  %v956 = vrot.slane %v910, 7
  %v957 = vrot.slane %v956, 2
  %v958 = vrot.slane %v922, 7
  %v959 = vrot.slane %v958, 2
  %v960 = vrot.slane %v923, 7
  %v961 = vrot.slane %v960, 2
  %v962 = vrot.slane %v924, 7
  %v963 = vrot.slane %v962, 2
  %v964 = vrot.slane %v911, 7
  %v965 = vrot.slane %v964, 2
  %v966 = vrot.slane %v925, 7
  %v967 = vrot.slane %v966, 2
  %v968 = vrot.slane %v926, 7
  %v969 = vrot.slane %v968, 2
  %v970 = vrot.slane %v927, 7
  %v971 = vrot.slane %v970, 2
  %v988 = vmax.f32 %v908, %v941
  %v989 = vmax.f32 %v916, %v943
  %v990 = vmax.f32 %v917, %v945
  %v991 = vmax.f32 %v918, %v947
  %v992 = vmax.f32 %v909, %v949
  %v993 = vmax.f32 %v919, %v951
  %v994 = vmax.f32 %v920, %v953
  %v995 = vmax.f32 %v921, %v955
  %v996 = vmax.f32 %v910, %v957
  %v997 = vmax.f32 %v922, %v959
  %v998 = vmax.f32 %v923, %v961
  %v999 = vmax.f32 %v924, %v963
  %v1000 = vmax.f32 %v911, %v965
  %v1001 = vmax.f32 %v925, %v967
  %v1002 = vmax.f32 %v926, %v969
  %v1003 = vmax.f32 %v927, %v971
  %v1004 = vld [vmem:[%s3] sm:$0xff]
  %v1005 = vld [vmem:[%s3 + $0x8] sm:$0xff]
  %v1006 = vld [vmem:[%s3 + $0x10] sm:$0xff]
  %v1007 = vld [vmem:[%s3 + $0x18] sm:$0xff]
  %v1008 = vld [vmem:[%s3 + $0x20] sm:$0xff]
  %v1009 = vld [vmem:[%s3 + $0x28] sm:$0xff]
  %v1010 = vld [vmem:[%s3 + $0x30] sm:$0xff]
  %v1011 = vld [vmem:[%s3 + $0x38] sm:$0xff]
  %v1012 = vld [vmem:[%s3 + $0x40] sm:$0xff]
  %v1013 = vld [vmem:[%s3 + $0x48] sm:$0xff]
  %v1014 = vld [vmem:[%s3 + $0x50] sm:$0xff]
  %v1015 = vld [vmem:[%s3 + $0x58] sm:$0xff]
  %v1016 = vld [vmem:[%s3 + $0x60] sm:$0xff]
  %v1017 = vld [vmem:[%s3 + $0x68] sm:$0xff]
  %v1018 = vld [vmem:[%s3 + $0x70] sm:$0xff]
  %v1019 = vld [vmem:[%s3 + $0x78] sm:$0xff]
  %v1024 = vperm.slane %v989, 0
  %v1025 = vperm.slane %v993, 0
  %v1026 = vperm.slane %v997, 0
  %v1027 = vperm.slane %v1001, 0
  %v1028 = vsel %vm679, %v1025, %v1024
  %v1029 = vsel %vm681, %v1026, %v1028
  %v1030 = vsel %vm683, %v1027, %v1029
  %vm1031 = vcmask 523264
  %v1032 = vsel %vm1031, %v1030, 0
  %1034 = vmatpush.msra.mxu0 0.0
  %1035 = vmatpush.msra.mxu0 0.0
  %1036 = vmatpush.msra.mxu0 0.0
  %1037 = vmatpush.msra.mxu0 0.0
  %1038 = vmatpush.msra.mxu0 0.0
  %1039 = vmatpush.msra.mxu0 0.0
  %1040 = vmatpush.msra.mxu0 0.0
  %1041 = vmatpush.msra.mxu0 0.0
  %1042 = vmatpush.msra.mxu0 %v1019
  %1043 = vmatpush.msra.mxu0 %v1018
  %1044 = vmatpush.msra.mxu0 %v1017
  %1045 = vmatpush.msra.mxu0 %v1016
  %1046 = vmatpush.msra.mxu0 %v1015
  %1047 = vmatpush.msra.mxu0 %v1014
  %1048 = vmatpush.msra.mxu0 %v1013
  %1049 = vmatpush.msra.mxu0 %v1012
  %1050 = vmatmul.f32.gmra.mxu0 %v1032
  %v1051 = vpop.f32.mrf.mxu0
  %v1052 = vadd.f32 0.0, %v1051
  %1053 = vdwg.mxu0
  %v1058 = vperm.slane %v988, 0
  %v1059 = vperm.slane %v992, 0
  %v1060 = vperm.slane %v996, 0
  %v1061 = vperm.slane %v1000, 0
  %v1062 = vsel %vm679, %v1059, %v1058
  %v1063 = vsel %vm681, %v1060, %v1062
  %v1064 = vsel %vm683, %v1061, %v1063
  %v1065 = vsel %vm1031, %v1064, 0
  %1067 = vmatpush.msra.mxu0 0.0
  %1068 = vmatpush.msra.mxu0 0.0
  %1069 = vmatpush.msra.mxu0 0.0
  %1070 = vmatpush.msra.mxu0 0.0
  %1071 = vmatpush.msra.mxu0 0.0
  %1072 = vmatpush.msra.mxu0 0.0
  %1073 = vmatpush.msra.mxu0 0.0
  %1074 = vmatpush.msra.mxu0 0.0
  %1075 = vmatpush.msra.mxu0 %v1011
  %1076 = vmatpush.msra.mxu0 %v1010
  %1077 = vmatpush.msra.mxu0 %v1009
  %1078 = vmatpush.msra.mxu0 %v1008
  %1079 = vmatpush.msra.mxu0 %v1007
  %1080 = vmatpush.msra.mxu0 %v1006
  %1081 = vmatpush.msra.mxu0 %v1005
  %1082 = vmatpush.msra.mxu0 %v1004
  %1083 = vmatmul.f32.gmra.mxu0 %v1065
  %v1084 = vpop.f32.mrf.mxu0
  %v1085 = vadd.f32 %v1052, %v1084
  %1086 = vdwg.mxu0
  %v1087 = vld [vmem:[%s3 + $0x80] sm:$0xff]
  %v1088 = vld [vmem:[%s3 + $0x88] sm:$0xff]
  %v1089 = vld [vmem:[%s3 + $0x90] sm:$0xff]
  %v1090 = vld [vmem:[%s3 + $0x98] sm:$0xff]
  %v1091 = vld [vmem:[%s3 + $0xa0] sm:$0xff]
  %v1092 = vld [vmem:[%s3 + $0xa8] sm:$0xff]
  %v1093 = vld [vmem:[%s3 + $0xb0] sm:$0xff]
  %v1094 = vld [vmem:[%s3 + $0xb8] sm:$0xff]
  %v1099 = vperm.slane %v990, 0
  %v1100 = vperm.slane %v994, 0
  %v1101 = vperm.slane %v998, 0
  %v1102 = vperm.slane %v1002, 0
  %v1103 = vsel %vm679, %v1100, %v1099
  %v1104 = vsel %vm681, %v1101, %v1103
  %v1105 = vsel %vm683, %v1102, %v1104
  %v1106 = vsel %vm1031, %v1105, 0
  %1108 = vmatpush.msra.mxu0 0.0
  %1109 = vmatpush.msra.mxu0 0.0
  %1110 = vmatpush.msra.mxu0 0.0
  %1111 = vmatpush.msra.mxu0 0.0
  %1112 = vmatpush.msra.mxu0 0.0
  %1113 = vmatpush.msra.mxu0 0.0
  %1114 = vmatpush.msra.mxu0 0.0
  %1115 = vmatpush.msra.mxu0 0.0
  %1116 = vmatpush.msra.mxu0 %v1094
  %1117 = vmatpush.msra.mxu0 %v1093
  %1118 = vmatpush.msra.mxu0 %v1092
  %1119 = vmatpush.msra.mxu0 %v1091
  %1120 = vmatpush.msra.mxu0 %v1090
  %1121 = vmatpush.msra.mxu0 %v1089
  %1122 = vmatpush.msra.mxu0 %v1088
  %1123 = vmatpush.msra.mxu0 %v1087
  %1124 = vmatmul.f32.gmra.mxu0 %v1106
  %v1125 = vpop.f32.mrf.mxu0
  %v1126 = vadd.f32 0.0, %v1125
  %1127 = vdwg.mxu0
  %v1128 = vadd.f32 %v1085, %v1126
  %v1129 = vld [vmem:[%s3 + $0xc0] sm:$0xff]
  %v1130 = vld [vmem:[%s3 + $0xc8] sm:$0xff]
  %v1131 = vld [vmem:[%s3 + $0xd0] sm:$0xff]
  %v1132 = vld [vmem:[%s3 + $0xd8] sm:$0xff]
  %v1133 = vld [vmem:[%s3 + $0xe0] sm:$0xff]
  %v1134 = vld [vmem:[%s3 + $0xe8] sm:$0xff]
  %v1135 = vld [vmem:[%s3 + $0xf0] sm:$0xff]
  %v1136 = vld [vmem:[%s3 + $0xf8] sm:$0xff]
  %v1141 = vperm.slane %v991, 0
  %v1142 = vperm.slane %v995, 0
  %v1143 = vperm.slane %v999, 0
  %v1144 = vperm.slane %v1003, 0
  %v1145 = vsel %vm679, %v1142, %v1141
  %v1146 = vsel %vm681, %v1143, %v1145
  %v1147 = vsel %vm683, %v1144, %v1146
  %v1148 = vsel %vm1031, %v1147, 0
  %1150 = vmatpush.msra.mxu0 0.0
  %1151 = vmatpush.msra.mxu0 0.0
  %1152 = vmatpush.msra.mxu0 0.0
  %1153 = vmatpush.msra.mxu0 0.0
  %1154 = vmatpush.msra.mxu0 0.0
  %1155 = vmatpush.msra.mxu0 0.0
  %1156 = vmatpush.msra.mxu0 0.0
  %1157 = vmatpush.msra.mxu0 0.0
  %1158 = vmatpush.msra.mxu0 %v1136
  %1159 = vmatpush.msra.mxu0 %v1135
  %1160 = vmatpush.msra.mxu0 %v1134
  %1161 = vmatpush.msra.mxu0 %v1133
  %1162 = vmatpush.msra.mxu0 %v1132
  %1163 = vmatpush.msra.mxu0 %v1131
  %1164 = vmatpush.msra.mxu0 %v1130
  %1165 = vmatpush.msra.mxu0 %v1129
  %1166 = vmatmul.f32.gmra.mxu0 %v1148
  %v1167 = vpop.f32.mrf.mxu0
  %v1168 = vadd.f32 0.0, %v1167
  %1169 = vdwg.mxu0
  %v1170 = vadd.f32 %v1128, %v1168
  %v1171 = vld [vmem:[%s3 + $0x100] sm:$0x1]
  %v1172 = vperm.slane %v1171, 0
  %v1173 = vadd.f32 %v1170, %v1172
  %v1174 = vmax.f32 %v1173, 0.0
  %v1175 = vld [vmem:[%s4] sm:$0x1]
  %v1176 = vperm.slane %v1175, 0
  %v1177 = vmul.f32 %v1174, %v1176
  %vm1178 = vcmask 519168
  %v1179 = vsel %vm1178, %v1177, 0.0
  %1180 = vadd.xlane.f32.xlu0 %v1179
  %v1181 = vpop.xlane.xlu0 %1180
  %v1182 = vld [vmem:[%s4 + $0x1] sm:$0x1]
  %v1183 = vperm.slane %v1182, 0
  %v1184 = vadd.f32 %v1181, %v1183
  %v1185 = vxor.u32 %v1184, 2147483648
  %v1186 = vmul.f32 %v1185, 1.442695
  %v1187 = vpow.pop %v1186
  %v1188 = vadd.f32 %v1187, 1.0
  %v1189 = vrcp.pop %v1188
  %v1190 = vmul.f32 %v1188, %v1189
  %v1191 = vsub.f32 1.0, %v1190
  %v1192 = vmul.f32 %v1189, %v1191
  %v1193 = vadd.f32 %v1189, %v1192
  %vm1194 = vweird.f32 %v1188
  %vm1195 = vweird.f32 %v1189
  %vm1196 = vmor %vm1194, %vm1195
  %v1197 = vsel %vm1196, %v1189, %v1193
  %v1198 = vand.u32 2147483647, %v1188
  %vm1199 = vcmp.eq.f32.partialorder %v1198, 8.507059e+37
  %v1200 = vand.u32 %v1188, 2147483648
  %v1201 = vor.u32 1.1754944e-38, %v1200
  %v1202 = vsel %vm1199, %v1201, %v1197
  %v1203 = vmul.f32 1.0, %v1202
  %vm1204 = vcmask 3072
  %1205 = vst.msk [vmem:[%s5] sm:$0xf] %vm1204, %v1203
  // Predicated region
  $region22: #{tpu_custom_call.1} parent=0 // pred_check
    _
  $region23: #{tpu_custom_call.1} parent=0 // pred_check_branch
    %1207 = sbr.rel (0) target = $region25
  $region24: #{tpu_custom_call.1} parent=0 // pred_region
    _
  $region25: #{tpu_custom_call.1} parent=0 // pred_fallthru
    _
  // Predicated region
  $region26: #{tpu_custom_call.1} parent=0 // pred_check
    _
  $region27: #{tpu_custom_call.1} parent=0 // pred_check_branch
    %1209 = sbr.rel (0) target = $region29
  $region28: #{tpu_custom_call.1} parent=0 // pred_region
    _
  $region29: #{tpu_custom_call.1} parent=0 // pred_fallthru
    _

</llo_original>
